<compile_context>
chip_gen: v7x
topology: tpu7x:2x2x1
jax: 0.10.0
libtpu: 0.0.40
codegen_flags: <defaults>
</compile_context>

<pallas_src>
import functools
from typing import NamedTuple

import jax
import jax.numpy as jnp
from jax import lax
from jax.experimental import pallas as pl
from jax.experimental.pallas import tpu as pltpu


H2_PAD = 128  # lane-dense tower-output width (original H2=64 is zero-padded)


class TilePlan(NamedTuple):
    num_items: int      # original catalog size I
    item_tile: int      # rows of the item table per grid step (multiple of 128)
    n_tiles: int        # grid steps
    padded_items: int   # n_tiles * item_tile


# ---------------------------------------------------------------------------
# Kernel: item-tower MLP + scores for one item tile
# ---------------------------------------------------------------------------

def item_scores_kernel(uvec_ref, i_emb_ref, w1_ref, b1_ref, w2_ref, b2_ref,
                       scores_ref):
    # Item tower MLP for this tile: [TI, D] -> [TI, H2_PAD]
    h = jnp.dot(i_emb_ref[...], w1_ref[...],
                preferred_element_type=jnp.float32) + b1_ref[...]
    h = jnp.maximum(h, 0.0).astype(jnp.bfloat16)
    ivec = jnp.dot(h, w2_ref[...],
                   preferred_element_type=jnp.float32) + b2_ref[...]
    ivec = jnp.maximum(ivec, 0.0).astype(jnp.bfloat16)

    # scores [B, TI]: contract uvec [B, H2] with ivec [TI, H2] on the shared
    # H2 axis (MXU transposed-RHS path; no explicit ivec.T materialized).
    scores = lax.dot_general(uvec_ref[...], ivec, (((1,), (1,)), ((), ())),
                             preferred_element_type=jnp.float32)
    # bf16 store: the score write dominates HBM traffic, keep it half-width.
    scores_ref[...] = scores.astype(scores_ref.dtype)


# ---------------------------------------------------------------------------
# Tiling plan + one-time parameter preparation (outside the hot path)
# ---------------------------------------------------------------------------

def _plan_item_tiling(num_items, item_tile):
    """Pick a lane-aligned item tile such that the item grid has >= 2 steps
    whenever the catalog allows it (v7x megacore sharding) and the padded
    catalog is a whole number of tiles."""
    item_tile = max(128, (item_tile // 128) * 128)
    i_lanes = pl.cdiv(num_items, 128) * 128
    if i_lanes >= 256:
        # cap at half the lane-rounded catalog -> at least two grid steps
        item_tile = min(item_tile, max(128, (i_lanes // 2 // 128) * 128))
    else:
        item_tile = i_lanes
    n_tiles = pl.cdiv(i_lanes, item_tile)
    padded_items = n_tiles * item_tile
    return TilePlan(num_items, item_tile, n_tiles, padded_items)


def prepare_params(params, *, item_tile=4096, compute_dtype=jnp.bfloat16):
    """One-time prep: bf16 casts, H2 zero-padding to 128, item-table padding
    to a whole number of tiles. Call once, reuse across forward calls."""
    I, D = params["item_table"].shape
    H2 = params["w2i"].shape[1]
    plan = _plan_item_tiling(I, item_tile)

    cast = lambda x: x.astype(compute_dtype)
    f32 = lambda x: x.astype(jnp.float32)
    pad_h2 = lambda m: jnp.pad(m, ((0, 0), (0, H2_PAD - H2)))

    item_tab = cast(params["item_table"])
    if plan.padded_items != I:
        item_tab = jnp.pad(item_tab, ((0, plan.padded_items - I), (0, 0)))

    prep = {
        "user_table": params["user_table"],
        "item_table_bf16": item_tab,                       # [I_pad, D] bf16
        # user tower (plain JAX)
        "w1u": cast(params["w1u"]), "b1u": f32(params["b1u"]),
        "w2u": cast(pad_h2(params["w2u"])), "b2u": f32(pad_h2(params["b2u"])),
        # item tower (kernel operands)
        "w1i": cast(params["w1i"]), "b1i": f32(params["b1i"]),
        "w2i": cast(pad_h2(params["w2i"])), "b2i": f32(pad_h2(params["b2i"])),
    }
    return prep, plan


# ---------------------------------------------------------------------------
# Forward pass
# ---------------------------------------------------------------------------

def user_tower(user_input, prep, compute_dtype=jnp.bfloat16):
    """Plain-JAX user tower: gather + 2-layer MLP (too small for a kernel)."""
    u_emb = prep["user_table"][user_input[:, 0]].astype(compute_dtype)
    h = jnp.dot(u_emb, prep["w1u"],
                preferred_element_type=jnp.float32) + prep["b1u"]
    h = jnp.maximum(h, 0.0).astype(compute_dtype)
    uvec = jnp.dot(h, prep["w2u"],
                   preferred_element_type=jnp.float32) + prep["b2u"]
    return jnp.maximum(uvec, 0.0).astype(compute_dtype)      # [B, H2_PAD] bf16


def two_tower_scores(uvec, prep, plan):
    B, H2p = uvec.shape
    I_pad, D = prep["item_table_bf16"].shape
    H1 = prep["w1i"].shape[1]
    assert I_pad == plan.padded_items

    full = lambda shape: pl.BlockSpec(shape, lambda i: (0, 0))

    scores = pl.pallas_call(
        item_scores_kernel,
        out_shape=jax.ShapeDtypeStruct((B, I_pad), jnp.bfloat16),
        grid_spec=pltpu.PrefetchScalarGridSpec(
            num_scalar_prefetch=0,
            grid=(plan.n_tiles,),
            in_specs=[
                full((B, H2p)),                                      # uvec
                pl.BlockSpec((plan.item_tile, D), lambda i: (i, 0)), # item tile
                full((D, H1)), full((1, H1)),                        # layer 1
                full((H1, H2p)), full((1, H2p)),                     # layer 2
            ],
            out_specs=pl.BlockSpec((B, plan.item_tile), lambda i: (0, i)),
        ),
        compiler_params=pltpu.CompilerParams(
            # item tiles are independent -> megacore sharding on v7x
            dimension_semantics=("parallel",)),
    )(uvec, prep["item_table_bf16"],
      prep["w1i"], prep["b1i"], prep["w2i"], prep["b2i"])

    # Drop padded catalog rows. Scores stay bf16 (cast at the consumer only if
    # f32 is truly required; an extra f32 copy here would undo the HBM win).
    return scores[:, :plan.num_items]


def two_tower_forward(user_input, prep, plan):
    uvec = user_tower(user_input, prep)
    return two_tower_scores(uvec, prep, plan)                # [B, I] bf16


# ---------------------------------------------------------------------------
# Params / reference
# ---------------------------------------------------------------------------

def init_params(key, num_users, num_items, embedding_dim, hidden_units):
    ks = jax.random.split(key, 10)
    D, H1, H2 = embedding_dim, hidden_units[0], hidden_units[1]

    def lin_w(k, fan_in, fan_out):
        bound = 1.0 / jnp.sqrt(fan_in)
        return jax.random.uniform(k, (fan_in, fan_out), jnp.float32, -bound, bound)

    def lin_b(k, fan_in, fan_out):
        bound = 1.0 / jnp.sqrt(fan_in)
        return jax.random.uniform(k, (1, fan_out), jnp.float32, -bound, bound)

    return {
        # nn.Embedding default init: N(0, 1)
        "user_table": jax.random.normal(ks[0], (num_users, D), jnp.float32),
        "item_table": jax.random.normal(ks[1], (num_items, D), jnp.float32),
        # user tower MLP (weights stored [in, out])
        "w1u": lin_w(ks[2], D, H1), "b1u": lin_b(ks[3], D, H1),
        "w2u": lin_w(ks[4], H1, H2), "b2u": lin_b(ks[5], H1, H2),
        # item tower MLP
        "w1i": lin_w(ks[6], D, H1), "b1i": lin_b(ks[7], D, H1),
        "w2i": lin_w(ks[8], H1, H2), "b2i": lin_b(ks[9], H1, H2),
    }


def reference_forward(user_input, params, compute_dtype=jnp.bfloat16):
    """Plain-JAX reference using the same bf16-operand / f32-accumulate recipe."""
    cast = lambda x: x.astype(compute_dtype)

    def mlp(x, w1, b1, w2, b2):
        h = jnp.dot(cast(x), cast(w1), preferred_element_type=jnp.float32) + b1
        h = cast(jnp.maximum(h, 0.0))
        y = jnp.dot(h, cast(w2), preferred_element_type=jnp.float32) + b2
        return jnp.maximum(y, 0.0)

    u = params["user_table"][user_input[:, 0]]
    uvec = cast(mlp(u, params["w1u"], params["b1u"], params["w2u"], params["b2u"]))
    v = params["item_table"]
    ivec = cast(mlp(v, params["w1i"], params["b1i"], params["w2i"], params["b2i"]))
    return lax.dot_general(uvec, ivec, (((1,), (1,)), ((), ())),
                           preferred_element_type=jnp.float32)


if __name__ == "__main__":
    # Shapes from the original module spec.
    embedding_dim = 64
    hidden_units = [128, 64]
    batch_size = 128
    num_items = 500        # item tower scores ALL items (arange(num_items))
    num_users = 1000

    key = jax.random.PRNGKey(0)
    pkey, ikey = jax.random.split(key)
    params = init_params(pkey, num_users, num_items, embedding_dim, hidden_units)

    # One-time prep (bf16 casts / padding) — NOT part of the per-call hot path.
    prep, plan = prepare_params(params, item_tile=4096)

    # user_input: [B, 1] int ids, like torch.randint(0, num_users, (B, 1))
    user_input = jax.random.randint(ikey, (batch_size, 1), 0, num_users, jnp.int32)

    fwd = jax.jit(functools.partial(two_tower_forward, plan=plan))
    scores = jax.block_until_ready(fwd(user_input, prep))

    ref = reference_forward(user_input, params)
    ref_bf16 = ref.astype(jnp.bfloat16).astype(jnp.float32)   # match bf16 score store

    assert scores.shape == (batch_size, num_items)
    assert scores.dtype == jnp.bfloat16
    err = float(jnp.max(jnp.abs(scores.astype(jnp.float32) - ref_bf16)))
    assert jnp.allclose(scores.astype(jnp.float32), ref_bf16,
                        atol=2e-2, rtol=2e-2), err

    print("KERNEL_OK")
</pallas_src>

<mosaic_0001>
module attributes {stable_mosaic.version = 11 : i64} {
  func.func @item_scores_kernel(%arg0: i32, %arg1: memref<128x128xbf16, #tpu.memory_space<vmem>>, %arg2: memref<256x64xbf16, #tpu.memory_space<vmem>>, %arg3: memref<64x128xbf16, #tpu.memory_space<vmem>>, %arg4: memref<1x128xf32, #tpu.memory_space<vmem>>, %arg5: memref<128x128xbf16, #tpu.memory_space<vmem>>, %arg6: memref<1x128xf32, #tpu.memory_space<vmem>>, %arg7: memref<128x256xbf16, #tpu.memory_space<vmem>>) attributes {dimension_semantics = [#tpu.dimension_semantics<parallel>], iteration_bounds = array<i64: 2>, scalar_prefetch = 0 : i64, scratch_operands = 0 : i64, tpu.core_type = #tpu.core_type<tc>, window_params = [{pipeline_mode = #tpu.pipeline_mode<synchronous>, transform_indices = @transform_0, window_bounds = array<i64: 128, 128>}, {transform_indices = @transform_1, window_bounds = array<i64: 256, 64>}, {pipeline_mode = #tpu.pipeline_mode<synchronous>, transform_indices = @transform_2, window_bounds = array<i64: 64, 128>}, {pipeline_mode = #tpu.pipeline_mode<synchronous>, transform_indices = @transform_3, window_bounds = array<i64: 1, 128>}, {pipeline_mode = #tpu.pipeline_mode<synchronous>, transform_indices = @transform_4, window_bounds = array<i64: 128, 128>}, {pipeline_mode = #tpu.pipeline_mode<synchronous>, transform_indices = @transform_5, window_bounds = array<i64: 1, 128>}, {transform_indices = @transform_6, window_bounds = array<i64: 128, 256>}]} {
    %c0 = arith.constant 0 : index
    %c0_0 = arith.constant 0 : index
    %0 = vector.load %arg2[%c0, %c0_0] : memref<256x64xbf16, #tpu.memory_space<vmem>>, vector<256x64xbf16>
    %c0_1 = arith.constant 0 : index
    %c0_2 = arith.constant 0 : index
    %1 = vector.load %arg3[%c0_1, %c0_2] : memref<64x128xbf16, #tpu.memory_space<vmem>>, vector<64x128xbf16>
    %cst = arith.constant dense<0.000000e+00> : vector<256x128xf32>
    %2 = tpu.matmul %0, %1, %cst {dimension_numbers = #tpu.dot_dimension_numbers<[1], [0], [0], [1], [0, 0, 1, 1], [], []>} : vector<256x64xbf16>, vector<64x128xbf16>, vector<256x128xf32> -> vector<256x128xf32>
    %c0_3 = arith.constant 0 : index
    %c0_4 = arith.constant 0 : index
    %3 = vector.load %arg4[%c0_3, %c0_4] : memref<1x128xf32, #tpu.memory_space<vmem>>, vector<1x128xf32>
    %4 = vector.broadcast %3 : vector<1x128xf32> to vector<256x128xf32>
    %5 = arith.addf %2, %4 : vector<256x128xf32>
    %cst_5 = arith.constant 0.000000e+00 : f32
    %6 = vector.broadcast %cst_5 : f32 to vector<256x128xf32>
    %7 = arith.maximumf %5, %6 : vector<256x128xf32>
    %8 = arith.truncf %7 : vector<256x128xf32> to vector<256x128xbf16>
    %c0_6 = arith.constant 0 : index
    %c0_7 = arith.constant 0 : index
    %9 = vector.load %arg5[%c0_6, %c0_7] : memref<128x128xbf16, #tpu.memory_space<vmem>>, vector<128x128xbf16>
    %cst_8 = arith.constant dense<0.000000e+00> : vector<256x128xf32>
    %10 = tpu.matmul %8, %9, %cst_8 {dimension_numbers = #tpu.dot_dimension_numbers<[1], [0], [0], [1], [0, 0, 1, 1], [], []>} : vector<256x128xbf16>, vector<128x128xbf16>, vector<256x128xf32> -> vector<256x128xf32>
    %c0_9 = arith.constant 0 : index
    %c0_10 = arith.constant 0 : index
    %11 = vector.load %arg6[%c0_9, %c0_10] : memref<1x128xf32, #tpu.memory_space<vmem>>, vector<1x128xf32>
    %12 = vector.broadcast %11 : vector<1x128xf32> to vector<256x128xf32>
    %13 = arith.addf %10, %12 : vector<256x128xf32>
    %cst_11 = arith.constant 0.000000e+00 : f32
    %14 = vector.broadcast %cst_11 : f32 to vector<256x128xf32>
    %15 = arith.maximumf %13, %14 : vector<256x128xf32>
    %16 = arith.truncf %15 : vector<256x128xf32> to vector<256x128xbf16>
    %c0_12 = arith.constant 0 : index
    %c0_13 = arith.constant 0 : index
    %17 = vector.load %arg1[%c0_12, %c0_13] : memref<128x128xbf16, #tpu.memory_space<vmem>>, vector<128x128xbf16>
    %cst_14 = arith.constant dense<0.000000e+00> : vector<128x256xf32>
    %18 = tpu.matmul %17, %16, %cst_14 {dimension_numbers = #tpu.dot_dimension_numbers<[1], [1], [0], [0], [0, 0, 1, 0], [], []>} : vector<128x128xbf16>, vector<256x128xbf16>, vector<128x256xf32> -> vector<128x256xf32>
    %19 = arith.truncf %18 : vector<128x256xf32> to vector<128x256xbf16>
    %c0_15 = arith.constant 0 : index
    %c0_16 = arith.constant 0 : index
    %20 = vector.load %arg7[%c0_15, %c0_16] : memref<128x256xbf16, #tpu.memory_space<vmem>>, vector<128x256xbf16>
    tpu.vector_store %arg7[%c0_15, %c0_16], %19 {strides = array<i32>} : memref<128x256xbf16, #tpu.memory_space<vmem>>, vector<128x256xbf16>,
    return
  }
  func.func @transform_0(%arg0: i32) -> (i32, i32) {
    %c0_i32 = arith.constant 0 : i32
    %c0_i32_0 = arith.constant 0 : i32
    %c0_i32_1 = arith.constant 0 : i32
    return %c0_i32, %c0_i32_0 : i32, i32
  }
  func.func @transform_1(%arg0: i32) -> (i32, i32) {
    %c0_i32 = arith.constant 0 : i32
    %c0_i32_0 = arith.constant 0 : i32
    return %arg0, %c0_i32 : i32, i32
  }
  func.func @transform_2(%arg0: i32) -> (i32, i32) {
    %c0_i32 = arith.constant 0 : i32
    %c0_i32_0 = arith.constant 0 : i32
    %c0_i32_1 = arith.constant 0 : i32
    return %c0_i32, %c0_i32_0 : i32, i32
  }
  func.func @transform_3(%arg0: i32) -> (i32, i32) {
    %c0_i32 = arith.constant 0 : i32
    %c0_i32_0 = arith.constant 0 : i32
    %c0_i32_1 = arith.constant 0 : i32
    return %c0_i32, %c0_i32_0 : i32, i32
  }
  func.func @transform_4(%arg0: i32) -> (i32, i32) {
    %c0_i32 = arith.constant 0 : i32
    %c0_i32_0 = arith.constant 0 : i32
    %c0_i32_1 = arith.constant 0 : i32
    return %c0_i32, %c0_i32_0 : i32, i32
  }
  func.func @transform_5(%arg0: i32) -> (i32, i32) {
    %c0_i32 = arith.constant 0 : i32
    %c0_i32_0 = arith.constant 0 : i32
    %c0_i32_1 = arith.constant 0 : i32
    return %c0_i32, %c0_i32_0 : i32, i32
  }
  func.func @transform_6(%arg0: i32) -> (i32, i32) {
    %c0_i32 = arith.constant 0 : i32
    %c0_i32_0 = arith.constant 0 : i32
    return %c0_i32, %arg0 : i32, i32
  }
}

</mosaic_0001>

<llo_original>
// kernel: two_tower_forward.1
$region0: #{two_tower_forward.1}
  #allocation0 [shape = 'u32[]', space=smem, size = 0x4, offset = 0x4, fixed_abs, tag = 'smem constant byte address 0x4 - core index']
  #allocation1 [shape = 'u32[144,128]{1,0:T(1,128)}', space=vmem, size = 0x12000, scoped, tag = 'internal scratch']
  %s0 = inlined_call_operand.vmem [shape: bf16[128,128], index: 0, kind: input, shape index: {}]
  %s1 = inlined_call_operand.vmem [shape: bf16[512,64], index: 1, kind: input, shape index: {}]
  %s2 = inlined_call_operand.vmem [shape: bf16[64,128], index: 2, kind: input, shape index: {}]
  %s3 = inlined_call_operand.vmem [shape: f32[1,128], index: 3, kind: input, shape index: {}]
  %s4 = inlined_call_operand.vmem [shape: bf16[128,128], index: 4, kind: input, shape index: {}]
  %s5 = inlined_call_operand.vmem [shape: f32[1,128], index: 5, kind: input, shape index: {}]
  %s6 = inlined_call_operand.vmem [shape: bf16[128,512], index: 6, kind: output, shape index: {}]
  %s7 = sld [smem:[#allocation0]]
  $region91: #{two_tower_forward.1} parent=0
    _
  %s9 = ssub.s32 1, %s7
  %s10 = scalar_select 0, %s9, %s7
  $region1: #{two_tower_forward.1} parent=0
    #allocation2 [shape = 'u8[131072]{0}', space=vmem, size = 0x20000, scoped, tag = 'output window, operand 0']
    loop: start=0, step=1, limit=4
    $region2: #{two_tower_forward.1} parent=1 // loop_pre_header
      _
    $region3: #{two_tower_forward.1} parent=1 // loop_header
      %s12 = sphi 0, %s16
      %p13 = scmp.ge.s32.totalorder %s12, 4
      %s20 = sphi 0, %s20
      %s22 = sphi 0, %s20
      %s23 = sphi 0, %s22
      %s37 = sphi 0, %s23
      %s43 = sphi 0, %s45
      %s46 = sphi 0, %s43
      %s47 = sphi 0, %s46
      %s63 = sphi 0, %s47
      %s67 = sphi 0, %s67
      %s69 = sphi 0, %s67
      %s70 = sphi 0, %s69
      %s84 = sphi 0, %s70
      %s88 = sphi 0, %s88
      %s90 = sphi 0, %s88
      %s91 = sphi 0, %s90
      %s105 = sphi 0, %s91
      %s109 = sphi 0, %s109
      %s111 = sphi 0, %s109
      %s112 = sphi 0, %s111
      %s126 = sphi 0, %s112
      %s130 = sphi 0, %s130
      %s132 = sphi 0, %s130
      %s133 = sphi 0, %s132
      %s147 = sphi 0, %s133
      %s153 = sphi 0, %s155
      %s156 = sphi 0, %s153
      %s157 = sphi 0, %s156
      %s173 = sphi 0, %s157
    $region4: #{two_tower_forward.1} parent=1 // loop_header_branch
      %15 = sbr.rel (%p13) target = $region8
    $region5: #{two_tower_forward.1} parent=1 // loop_body
      %s17 = ssub.s32 %s12, 1
      %s18 = ssub.s32 %s12, 2
      %s19 = sadd.s32 %s12, 1
      %s21 = sadd.s32 %s20, 1
      %p24 = scmp.eq.s32.totalorder %s12, 1
      %p25 = scmp.ne.s32.totalorder %s20, %s22
      %p26 = scmp.eq.s32.totalorder %s12, 0
      %p27 = por %p25, %p26
      %p28 = scmp.ne.s32.totalorder %s20, %s22
      %p29 = scmp.eq.s32.totalorder %s17, 1
      %p30 = por %p28, %p29
      %p31 = scmp.ne.s32.totalorder %s22, %s23
      %p32 = scmp.eq.s32.totalorder %s17, 0
      %p33 = por %p31, %p32
      %p34 = scmp.ne.s32.totalorder %s22, %s23
      %p35 = scmp.eq.s32.totalorder %s18, 1
      %p36 = por %p34, %p35
      %p38 = scmp.ne.s32.totalorder %s23, %s37
      %p39 = scmp.eq.s32.totalorder %s18, 0
      %p40 = por %p38, %p39
      %s41 = ssub.s32 %s12, %s19
      %p42 = scmp.eq.s32.totalorder %s41, 0
      %s44 = sadd.s32 %s43, 1
      %s45 = scalar_select %p42, %s43, %s44
      %p48 = pneg %p42
      %p49 = scmp.eq.s32.totalorder %s12, 1
      %p50 = por %p48, %p49
      %p51 = scmp.ne.s32.totalorder %s43, %s46
      %p52 = scmp.eq.s32.totalorder %s12, 0
      %p53 = por %p51, %p52
      %p54 = scmp.ne.s32.totalorder %s43, %s46
      %p55 = scmp.eq.s32.totalorder %s17, 1
      %p56 = por %p54, %p55
      %p57 = scmp.ne.s32.totalorder %s46, %s47
      %p58 = scmp.eq.s32.totalorder %s17, 0
      %p59 = por %p57, %p58
      %p60 = scmp.ne.s32.totalorder %s46, %s47
      %p61 = scmp.eq.s32.totalorder %s18, 1
      %p62 = por %p60, %p61
      %p64 = scmp.ne.s32.totalorder %s47, %s63
      %p65 = scmp.eq.s32.totalorder %s18, 0
      %p66 = por %p64, %p65
      %s68 = sadd.s32 %s67, 1
      %p71 = scmp.eq.s32.totalorder %s12, 1
      %p72 = scmp.ne.s32.totalorder %s67, %s69
      %p73 = scmp.eq.s32.totalorder %s12, 0
      %p74 = por %p72, %p73
      %p75 = scmp.ne.s32.totalorder %s67, %s69
      %p76 = scmp.eq.s32.totalorder %s17, 1
      %p77 = por %p75, %p76
      %p78 = scmp.ne.s32.totalorder %s69, %s70
      %p79 = scmp.eq.s32.totalorder %s17, 0
      %p80 = por %p78, %p79
      %p81 = scmp.ne.s32.totalorder %s69, %s70
      %p82 = scmp.eq.s32.totalorder %s18, 1
      %p83 = por %p81, %p82
      %p85 = scmp.ne.s32.totalorder %s70, %s84
      %p86 = scmp.eq.s32.totalorder %s18, 0
      %p87 = por %p85, %p86
      %s89 = sadd.s32 %s88, 1
      %p92 = scmp.eq.s32.totalorder %s12, 1
      %p93 = scmp.ne.s32.totalorder %s88, %s90
      %p94 = scmp.eq.s32.totalorder %s12, 0
      %p95 = por %p93, %p94
      %p96 = scmp.ne.s32.totalorder %s88, %s90
      %p97 = scmp.eq.s32.totalorder %s17, 1
      %p98 = por %p96, %p97
      %p99 = scmp.ne.s32.totalorder %s90, %s91
      %p100 = scmp.eq.s32.totalorder %s17, 0
      %p101 = por %p99, %p100
      %p102 = scmp.ne.s32.totalorder %s90, %s91
      %p103 = scmp.eq.s32.totalorder %s18, 1
      %p104 = por %p102, %p103
      %p106 = scmp.ne.s32.totalorder %s91, %s105
      %p107 = scmp.eq.s32.totalorder %s18, 0
      %p108 = por %p106, %p107
      %s110 = sadd.s32 %s109, 1
      %p113 = scmp.eq.s32.totalorder %s12, 1
      %p114 = scmp.ne.s32.totalorder %s109, %s111
      %p115 = scmp.eq.s32.totalorder %s12, 0
      %p116 = por %p114, %p115
      %p117 = scmp.ne.s32.totalorder %s109, %s111
      %p118 = scmp.eq.s32.totalorder %s17, 1
      %p119 = por %p117, %p118
      %p120 = scmp.ne.s32.totalorder %s111, %s112
      %p121 = scmp.eq.s32.totalorder %s17, 0
      %p122 = por %p120, %p121
      %p123 = scmp.ne.s32.totalorder %s111, %s112
      %p124 = scmp.eq.s32.totalorder %s18, 1
      %p125 = por %p123, %p124
      %p127 = scmp.ne.s32.totalorder %s112, %s126
      %p128 = scmp.eq.s32.totalorder %s18, 0
      %p129 = por %p127, %p128
      %s131 = sadd.s32 %s130, 1
      %p134 = scmp.eq.s32.totalorder %s12, 1
      %p135 = scmp.ne.s32.totalorder %s130, %s132
      %p136 = scmp.eq.s32.totalorder %s12, 0
      %p137 = por %p135, %p136
      %p138 = scmp.ne.s32.totalorder %s130, %s132
      %p139 = scmp.eq.s32.totalorder %s17, 1
      %p140 = por %p138, %p139
      %p141 = scmp.ne.s32.totalorder %s132, %s133
      %p142 = scmp.eq.s32.totalorder %s17, 0
      %p143 = por %p141, %p142
      %p144 = scmp.ne.s32.totalorder %s132, %s133
      %p145 = scmp.eq.s32.totalorder %s18, 1
      %p146 = por %p144, %p145
      %p148 = scmp.ne.s32.totalorder %s133, %s147
      %p149 = scmp.eq.s32.totalorder %s18, 0
      %p150 = por %p148, %p149
      %s151 = ssub.s32 %s12, %s19
      %p152 = scmp.eq.s32.totalorder %s151, 0
      %s154 = sadd.s32 %s153, 1
      %s155 = scalar_select %p152, %s153, %s154
      %p158 = pneg %p152
      %p159 = scmp.eq.s32.totalorder %s12, 1
      %p160 = por %p158, %p159
      %p161 = scmp.ne.s32.totalorder %s153, %s156
      %p162 = scmp.eq.s32.totalorder %s12, 0
      %p163 = por %p161, %p162
      %p164 = scmp.ne.s32.totalorder %s153, %s156
      %p165 = scmp.eq.s32.totalorder %s17, 1
      %p166 = por %p164, %p165
      %p167 = scmp.ne.s32.totalorder %s156, %s157
      %p168 = scmp.eq.s32.totalorder %s17, 0
      %p169 = por %p167, %p168
      %p170 = scmp.ne.s32.totalorder %s156, %s157
      %p171 = scmp.eq.s32.totalorder %s18, 1
      %p172 = por %p170, %p171
      %p174 = scmp.ne.s32.totalorder %s157, %s173
      %p175 = scmp.eq.s32.totalorder %s18, 0
      %p176 = por %p174, %p175
      %p177 = scmp.le.s32.totalorder 1, %s12
      %p178 = scmp.lt.s32.totalorder %s12, 3
      %p179 = pnand %p177, %p178
      %p180 = pneg %p179
      // Predicated region
      $region9: #{two_tower_forward.1} parent=5 // pred_check
        _
      $region10: #{two_tower_forward.1} parent=5 // pred_check_branch
        %182 = sbr.rel (%p179) target = $region12
      $region11: #{two_tower_forward.1} parent=5 // pred_region
        %s183 = ssub.s32 %s12, 1
        // Predicated region
        $region13: #{two_tower_forward.1} parent=11 // pred_check
          %p184 = pneg %p33
        $region14: #{two_tower_forward.1} parent=11 // pred_check_branch
          %186 = sbr.rel (%p184) target = $region16
        $region15: #{two_tower_forward.1} parent=11 // pred_region
          _
        $region16: #{two_tower_forward.1} parent=11 // pred_fallthru
          _
        // Predicated region
        $region17: #{two_tower_forward.1} parent=11 // pred_check
          %p187 = pneg %p80
        $region18: #{two_tower_forward.1} parent=11 // pred_check_branch
          %189 = sbr.rel (%p187) target = $region20
        $region19: #{two_tower_forward.1} parent=11 // pred_region
          _
        $region20: #{two_tower_forward.1} parent=11 // pred_fallthru
          _
        // Predicated region
        $region21: #{two_tower_forward.1} parent=11 // pred_check
          %p190 = pneg %p101
        $region22: #{two_tower_forward.1} parent=11 // pred_check_branch
          %192 = sbr.rel (%p190) target = $region24
        $region23: #{two_tower_forward.1} parent=11 // pred_region
          _
        $region24: #{two_tower_forward.1} parent=11 // pred_fallthru
          _
        // Predicated region
        $region25: #{two_tower_forward.1} parent=11 // pred_check
          %p193 = pneg %p122
        $region26: #{two_tower_forward.1} parent=11 // pred_check_branch
          %195 = sbr.rel (%p193) target = $region28
        $region27: #{two_tower_forward.1} parent=11 // pred_region
          _
        $region28: #{two_tower_forward.1} parent=11 // pred_fallthru
          _
        // Predicated region
        $region29: #{two_tower_forward.1} parent=11 // pred_check
          %p196 = pneg %p143
        $region30: #{two_tower_forward.1} parent=11 // pred_check_branch
          %198 = sbr.rel (%p196) target = $region32
        $region31: #{two_tower_forward.1} parent=11 // pred_region
          _
        $region32: #{two_tower_forward.1} parent=11 // pred_fallthru
          _
      $region12: #{two_tower_forward.1} parent=5 // pred_fallthru
        _
      %p199 = scmp.lt.s32.totalorder %s12, 2
      // Predicated region
      $region33: #{two_tower_forward.1} parent=5 // pred_check
        %p200 = pneg %p199
      $region34: #{two_tower_forward.1} parent=5 // pred_check_branch
        %202 = sbr.rel (%p200) target = $region36
      $region35: #{two_tower_forward.1} parent=5 // pred_region
        // Predicated region
        $region37: #{two_tower_forward.1} parent=35 // pred_check
          %p203 = pneg %p53
        $region38: #{two_tower_forward.1} parent=35 // pred_check_branch
          %205 = sbr.rel (%p203) target = $region40
        $region39: #{two_tower_forward.1} parent=35 // pred_region
          %s206 = smul.u32 32, %s12
          %p207 = scmp.lt.s32.totalorder %s206, 63
          %s208 = scalar_select %p207, %s206, 63
          %s209 = smul.addr %s208, 4
          %s210 = scalar_lea.vmem %s1, %s209
          %s211 = smul.u32 32, %s12
        $region40: #{two_tower_forward.1} parent=35 // pred_fallthru
          _
      $region36: #{two_tower_forward.1} parent=5 // pred_fallthru
        _
      %p212 = scmp.le.s32.totalorder 1, %s12
      %p213 = scmp.lt.s32.totalorder %s12, 3
      %p214 = pnand %p212, %p213
      %p215 = pneg %p214
      // Predicated region
      $region41: #{two_tower_forward.1} parent=5 // pred_check
        _
      $region42: #{two_tower_forward.1} parent=5 // pred_check_branch
        %217 = sbr.rel (%p214) target = $region44
      $region43: #{two_tower_forward.1} parent=5 // pred_region
        %s218 = ssub.s32 %s12, 1
        %p219 = pneg %p33
        %p220 = pneg %p30
        %s221 = smul.u32 32, %s17
        %p222 = scmp.lt.s32.totalorder %s221, 63
        %s223 = scalar_select %p222, %s221, 63
        %s224 = smul.addr %s223, 4
        %s225 = scalar_lea.vmem %s1, %s224
        %p226 = pneg %p59
        %p227 = pneg %p56
        %p228 = pneg %p80
        %p229 = pneg %p77
        %p230 = pneg %p101
        %p231 = pneg %p98
        %p232 = pneg %p122
        %p233 = pneg %p119
        %p234 = pneg %p143
        %p235 = pneg %p140
        %p236 = pneg %p169
        %p237 = pneg %p166
        %s238 = sand.u32 %s156, 1
        %s239 = sand.u32 %s156, 1
        %s240 = smul.addr %s239, 128
        %s241 = scalar_lea.vmem [#allocation2], %s240
        %s242 = smul.u32 32, %s17
        %p243 = scmp.lt.s32.totalorder %s242, 63
        %s244 = scalar_select %p243, %s242, 63
        %s245 = smul.addr %s244, 4
        %s246 = scalar_lea.vmem %s1, %s245
        %s247 = smul.u32 32, %s17
        %s248 = smul.u32 2, %s17
        %v250 = vld [vmem:[%s246] sm:$0xf]
        %v251 = vld [vmem:[%s246 + $0x4] sm:$0xf]
        %v252 = vld [vmem:[%s246 + $0x8] sm:$0xf]
        %v253 = vld [vmem:[%s246 + $0xc] sm:$0xf]
        %v254 = vld [vmem:[%s246 + $0x10] sm:$0xf]
        %v255 = vld [vmem:[%s246 + $0x14] sm:$0xf]
        %v256 = vld [vmem:[%s246 + $0x18] sm:$0xf]
        %v257 = vld [vmem:[%s246 + $0x1c] sm:$0xf]
        %v258 = vld [vmem:[%s246 + $0x20] sm:$0xf]
        %v259 = vld [vmem:[%s246 + $0x24] sm:$0xf]
        %v260 = vld [vmem:[%s246 + $0x28] sm:$0xf]
        %v261 = vld [vmem:[%s246 + $0x2c] sm:$0xf]
        %v262 = vld [vmem:[%s246 + $0x30] sm:$0xf]
        %v263 = vld [vmem:[%s246 + $0x34] sm:$0xf]
        %v264 = vld [vmem:[%s246 + $0x38] sm:$0xf]
        %v265 = vld [vmem:[%s246 + $0x3c] sm:$0xf]
        %v266 = vld [vmem:[%s246 + $0x40] sm:$0xf]
        %v267 = vld [vmem:[%s246 + $0x44] sm:$0xf]
        %v268 = vld [vmem:[%s246 + $0x48] sm:$0xf]
        %v269 = vld [vmem:[%s246 + $0x4c] sm:$0xf]
        %v270 = vld [vmem:[%s246 + $0x50] sm:$0xf]
        %v271 = vld [vmem:[%s246 + $0x54] sm:$0xf]
        %v272 = vld [vmem:[%s246 + $0x58] sm:$0xf]
        %v273 = vld [vmem:[%s246 + $0x5c] sm:$0xf]
        %v274 = vld [vmem:[%s246 + $0x60] sm:$0xf]
        %v275 = vld [vmem:[%s246 + $0x64] sm:$0xf]
        %v276 = vld [vmem:[%s246 + $0x68] sm:$0xf]
        %v277 = vld [vmem:[%s246 + $0x6c] sm:$0xf]
        %v278 = vld [vmem:[%s246 + $0x70] sm:$0xf]
        %v279 = vld [vmem:[%s246 + $0x74] sm:$0xf]
        %v280 = vld [vmem:[%s246 + $0x78] sm:$0xf]
        %v281 = vld [vmem:[%s246 + $0x7c] sm:$0xf]
        %v282 = vld [vmem:[%s2] sm:$0xf]
        %v283 = vld [vmem:[%s2 + $0x4] sm:$0xf]
        %v284 = vld [vmem:[%s2 + $0x8] sm:$0xf]
        %v285 = vld [vmem:[%s2 + $0xc] sm:$0xf]
        %v286 = vld [vmem:[%s2 + $0x10] sm:$0xf]
        %v287 = vld [vmem:[%s2 + $0x14] sm:$0xf]
        %v288 = vld [vmem:[%s2 + $0x18] sm:$0xf]
        %v289 = vld [vmem:[%s2 + $0x1c] sm:$0xf]
        %v290 = vld [vmem:[%s3] sm:$0x1]
        %v292 = vlaneseq
        %v293 = vshrl.u32 %v292, 7
        %v294 = vsub.s32 0, %v293
        %v295 = vrot.slane %v290, %v294
        %v329 = vunpack.c.l.b16 %v250
        %v330 = vunpack.c.l.b16 %v251
        %v331 = vunpack.c.l.b16 %v252
        %v332 = vunpack.c.l.b16 %v253
        %v333 = vunpack.c.l.b16 %v254
        %v334 = vunpack.c.l.b16 %v255
        %v335 = vunpack.c.l.b16 %v256
        %v336 = vunpack.c.l.b16 %v257
        %v337 = vunpack.c.l.b16 %v258
        %v338 = vunpack.c.l.b16 %v259
        %v339 = vunpack.c.l.b16 %v260
        %v340 = vunpack.c.l.b16 %v261
        %v341 = vunpack.c.l.b16 %v262
        %v342 = vunpack.c.l.b16 %v263
        %v343 = vunpack.c.l.b16 %v264
        %v344 = vunpack.c.l.b16 %v265
        %v345 = vunpack.c.l.b16 %v266
        %v346 = vunpack.c.l.b16 %v267
        %v347 = vunpack.c.l.b16 %v268
        %v348 = vunpack.c.l.b16 %v269
        %v349 = vunpack.c.l.b16 %v270
        %v350 = vunpack.c.l.b16 %v271
        %v351 = vunpack.c.l.b16 %v272
        %v352 = vunpack.c.l.b16 %v273
        %v353 = vunpack.c.l.b16 %v274
        %v354 = vunpack.c.l.b16 %v275
        %v355 = vunpack.c.l.b16 %v276
        %v356 = vunpack.c.l.b16 %v277
        %v357 = vunpack.c.l.b16 %v278
        %v358 = vunpack.c.l.b16 %v279
        %v359 = vunpack.c.l.b16 %v280
        %v360 = vunpack.c.l.b16 %v281
        %v361 = vpack.c.b16 %v330, %v329
        %v362 = vpack.c.b16 %v332, %v331
        %v363 = vpack.c.b16 %v334, %v333
        %v364 = vpack.c.b16 %v336, %v335
        %v365 = vpack.c.b16 %v338, %v337
        %v366 = vpack.c.b16 %v340, %v339
        %v367 = vpack.c.b16 %v342, %v341
        %v368 = vpack.c.b16 %v344, %v343
        %v369 = vpack.c.b16 %v346, %v345
        %v370 = vpack.c.b16 %v348, %v347
        %v371 = vpack.c.b16 %v350, %v349
        %v372 = vpack.c.b16 %v352, %v351
        %v373 = vpack.c.b16 %v354, %v353
        %v374 = vpack.c.b16 %v356, %v355
        %v375 = vpack.c.b16 %v358, %v357
        %v376 = vpack.c.b16 %v360, %v359
        %v385 = vunpack.c.l.b16 %v282
        %v386 = vunpack.c.l.b16 %v283
        %v387 = vunpack.c.l.b16 %v284
        %v388 = vunpack.c.l.b16 %v285
        %v389 = vunpack.c.l.b16 %v286
        %v390 = vunpack.c.l.b16 %v287
        %v391 = vunpack.c.l.b16 %v288
        %v392 = vunpack.c.l.b16 %v289
        %v393 = vpack.c.b16 %v386, %v385
        %v394 = vpack.c.b16 %v388, %v387
        %v395 = vpack.c.b16 %v390, %v389
        %v396 = vpack.c.b16 %v392, %v391
        %vm401 = vcmask 523264
        %v403 = vsel %vm401, %v361, 0
        %v406 = vsel %vm401, %v362, 0
        %v409 = vsel %vm401, %v363, 0
        %v412 = vsel %vm401, %v364, 0
        %v415 = vsel %vm401, %v365, 0
        %v418 = vsel %vm401, %v366, 0
        %v421 = vsel %vm401, %v367, 0
        %v424 = vsel %vm401, %v368, 0
        %v427 = vsel %vm401, %v369, 0
        %v430 = vsel %vm401, %v370, 0
        %v433 = vsel %vm401, %v371, 0
        %v436 = vsel %vm401, %v372, 0
        %v439 = vsel %vm401, %v373, 0
        %v442 = vsel %vm401, %v374, 0
        %v445 = vsel %vm401, %v375, 0
        %v448 = vsel %vm401, %v376, 0
        %450 = vmatprep.subr.bf16.mxu0 0
        %451 = vmatpush1.bf16.msra.mxu0 %v393
        %452 = vmatprep.subr.bf16.mxu0 0
        %453 = vmatpush1.bf16.msra.mxu0 %v394
        %454 = vmatprep.subr.bf16.mxu0 0
        %455 = vmatpush1.bf16.msra.mxu0 %v395
        %456 = vmatprep.subr.bf16.mxu0 0
        %457 = vmatpush1.bf16.msra.mxu0 %v396
        %458 = vmatprep.subr.bf16.mxu0 0
        %459 = vmatpush1.bf16.msra.mxu0 0
        %460 = vmatprep.subr.bf16.mxu0 0
        %461 = vmatpush1.bf16.msra.mxu0 0
        %462 = vmatprep.subr.bf16.mxu0 0
        %463 = vmatpush1.bf16.msra.mxu0 0
        %464 = vmatprep.subr.bf16.mxu0 0
        %465 = vmatpush1.bf16.msra.mxu0 0
        %466 = vmatprep.subr.bf16.mxu0 0
        %467 = vmatpush1.bf16.msra.mxu0 0
        %468 = vmatprep.subr.bf16.mxu0 0
        %469 = vmatpush1.bf16.msra.mxu0 0
        %470 = vmatprep.subr.bf16.mxu0 0
        %471 = vmatpush1.bf16.msra.mxu0 0
        %472 = vmatprep.subr.bf16.mxu0 0
        %473 = vmatpush1.bf16.msra.mxu0 0
        %474 = vmatprep.subr.bf16.mxu0 0
        %475 = vmatpush1.bf16.msra.mxu0 0
        %476 = vmatprep.subr.bf16.mxu0 0
        %477 = vmatpush1.bf16.msra.mxu0 0
        %478 = vmatprep.subr.bf16.mxu0 0
        %479 = vmatpush1.bf16.msra.mxu0 0
        %480 = vmatprep.subr.bf16.mxu0 0
        %481 = vmatpush1.bf16.msra.mxu0 0
        %482 = vmatprep.mubr.bf16.mxu0 0
        %483 = vmatmul.mubr.bf16.gmra.mrb[0].mxu0 %v403
        %v484 = vpop.f32.mrb[0].mxu0
        %v485 = vadd.f32 %v295, %v484
        %v486 = vpop.f32.mrb[0].mxu0
        %v487 = vpop.f32.mrb[0].mxu0
        %v488 = vadd.f32 %v295, %v487
        %v489 = vpop.f32.mrb[0].mxu0
        %490 = vmatprep.mubr.bf16.mxu0 0
        %491 = vmatmul.mubr.bf16.gmra.mrb[0].mxu0 %v406
        %v492 = vpop.f32.mrb[0].mxu0
        %v493 = vadd.f32 %v295, %v492
        %v494 = vpop.f32.mrb[0].mxu0
        %v495 = vpop.f32.mrb[0].mxu0
        %v496 = vadd.f32 %v295, %v495
        %v497 = vpop.f32.mrb[0].mxu0
        %498 = vmatprep.mubr.bf16.mxu0 0
        %499 = vmatmul.mubr.bf16.gmra.mrb[0].mxu0 %v409
        %v500 = vpop.f32.mrb[0].mxu0
        %v501 = vadd.f32 %v295, %v500
        %v502 = vpop.f32.mrb[0].mxu0
        %v503 = vpop.f32.mrb[0].mxu0
        %v504 = vadd.f32 %v295, %v503
        %v505 = vpop.f32.mrb[0].mxu0
        %506 = vmatprep.mubr.bf16.mxu0 0
        %507 = vmatmul.mubr.bf16.gmra.mrb[0].mxu0 %v412
        %v508 = vpop.f32.mrb[0].mxu0
        %v509 = vadd.f32 %v295, %v508
        %v510 = vpop.f32.mrb[0].mxu0
        %v511 = vpop.f32.mrb[0].mxu0
        %v512 = vadd.f32 %v295, %v511
        %v513 = vpop.f32.mrb[0].mxu0
        %514 = vmatprep.mubr.bf16.mxu0 0
        %515 = vmatmul.mubr.bf16.gmra.mrb[0].mxu0 %v415
        %v516 = vpop.f32.mrb[0].mxu0
        %v517 = vadd.f32 %v295, %v516
        %v518 = vpop.f32.mrb[0].mxu0
        %v519 = vpop.f32.mrb[0].mxu0
        %v520 = vadd.f32 %v295, %v519
        %v521 = vpop.f32.mrb[0].mxu0
        %522 = vmatprep.mubr.bf16.mxu0 0
        %523 = vmatmul.mubr.bf16.gmra.mrb[0].mxu0 %v418
        %v524 = vpop.f32.mrb[0].mxu0
        %v525 = vadd.f32 %v295, %v524
        %v526 = vpop.f32.mrb[0].mxu0
        %v527 = vpop.f32.mrb[0].mxu0
        %v528 = vadd.f32 %v295, %v527
        %v529 = vpop.f32.mrb[0].mxu0
        %530 = vmatprep.mubr.bf16.mxu0 0
        %531 = vmatmul.mubr.bf16.gmra.mrb[0].mxu0 %v421
        %v532 = vpop.f32.mrb[0].mxu0
        %v533 = vadd.f32 %v295, %v532
        %v534 = vpop.f32.mrb[0].mxu0
        %v535 = vpop.f32.mrb[0].mxu0
        %v536 = vadd.f32 %v295, %v535
        %v537 = vpop.f32.mrb[0].mxu0
        %538 = vmatprep.mubr.bf16.mxu0 0
        %539 = vmatmul.mubr.bf16.gmra.mrb[0].mxu0 %v424
        %v540 = vpop.f32.mrb[0].mxu0
        %v541 = vadd.f32 %v295, %v540
        %v542 = vpop.f32.mrb[0].mxu0
        %v543 = vpop.f32.mrb[0].mxu0
        %v544 = vadd.f32 %v295, %v543
        %v545 = vpop.f32.mrb[0].mxu0
        %546 = vmatprep.mubr.bf16.mxu0 0
        %547 = vmatmul.mubr.bf16.gmra.mrb[0].mxu0 %v427
        %v548 = vpop.f32.mrb[0].mxu0
        %v549 = vadd.f32 %v295, %v548
        %v550 = vpop.f32.mrb[0].mxu0
        %v551 = vpop.f32.mrb[0].mxu0
        %v552 = vadd.f32 %v295, %v551
        %v553 = vpop.f32.mrb[0].mxu0
        %554 = vmatprep.mubr.bf16.mxu0 0
        %555 = vmatmul.mubr.bf16.gmra.mrb[0].mxu0 %v430
        %v556 = vpop.f32.mrb[0].mxu0
        %v557 = vadd.f32 %v295, %v556
        %v558 = vpop.f32.mrb[0].mxu0
        %v559 = vpop.f32.mrb[0].mxu0
        %v560 = vadd.f32 %v295, %v559
        %v561 = vpop.f32.mrb[0].mxu0
        %562 = vmatprep.mubr.bf16.mxu0 0
        %563 = vmatmul.mubr.bf16.gmra.mrb[0].mxu0 %v433
        %v564 = vpop.f32.mrb[0].mxu0
        %v565 = vadd.f32 %v295, %v564
        %v566 = vpop.f32.mrb[0].mxu0
        %v567 = vpop.f32.mrb[0].mxu0
        %v568 = vadd.f32 %v295, %v567
        %v569 = vpop.f32.mrb[0].mxu0
        %570 = vmatprep.mubr.bf16.mxu0 0
        %571 = vmatmul.mubr.bf16.gmra.mrb[0].mxu0 %v436
        %v572 = vpop.f32.mrb[0].mxu0
        %v573 = vadd.f32 %v295, %v572
        %v574 = vpop.f32.mrb[0].mxu0
        %v575 = vpop.f32.mrb[0].mxu0
        %v576 = vadd.f32 %v295, %v575
        %v577 = vpop.f32.mrb[0].mxu0
        %578 = vmatprep.mubr.bf16.mxu0 0
        %579 = vmatmul.mubr.bf16.gmra.mrb[0].mxu0 %v439
        %v580 = vpop.f32.mrb[0].mxu0
        %v581 = vadd.f32 %v295, %v580
        %v582 = vpop.f32.mrb[0].mxu0
        %v583 = vpop.f32.mrb[0].mxu0
        %v584 = vadd.f32 %v295, %v583
        %v585 = vpop.f32.mrb[0].mxu0
        %586 = vmatprep.mubr.bf16.mxu0 0
        %587 = vmatmul.mubr.bf16.gmra.mrb[0].mxu0 %v442
        %v588 = vpop.f32.mrb[0].mxu0
        %v589 = vadd.f32 %v295, %v588
        %v590 = vpop.f32.mrb[0].mxu0
        %v591 = vpop.f32.mrb[0].mxu0
        %v592 = vadd.f32 %v295, %v591
        %v593 = vpop.f32.mrb[0].mxu0
        %594 = vmatprep.mubr.bf16.mxu0 0
        %595 = vmatmul.mubr.bf16.gmra.mrb[0].mxu0 %v445
        %v596 = vpop.f32.mrb[0].mxu0
        %v597 = vadd.f32 %v295, %v596
        %v598 = vpop.f32.mrb[0].mxu0
        %v599 = vpop.f32.mrb[0].mxu0
        %v600 = vadd.f32 %v295, %v599
        %v601 = vpop.f32.mrb[0].mxu0
        %602 = vmatprep.mubr.bf16.mxu0 0
        %603 = vmatmul.mubr.bf16.gmra.mrb[0].mxu0 %v448
        %v604 = vpop.f32.mrb[0].mxu0
        %v605 = vadd.f32 %v295, %v604
        %v606 = vpop.f32.mrb[0].mxu0
        %v607 = vpop.f32.mrb[0].mxu0
        %v608 = vadd.f32 %v295, %v607
        %v609 = vpop.f32.mrb[0].mxu0
        %610 = vdwg.mxu0
        %v611 = vmax.f32 %v485, 0.0
        %v612 = vmax.f32 %v488, 0.0
        %v613 = vmax.f32 %v493, 0.0
        %v614 = vmax.f32 %v496, 0.0
        %v615 = vmax.f32 %v501, 0.0
        %v616 = vmax.f32 %v504, 0.0
        %v617 = vmax.f32 %v509, 0.0
        %v618 = vmax.f32 %v512, 0.0
        %v619 = vmax.f32 %v517, 0.0
        %v620 = vmax.f32 %v520, 0.0
        %v621 = vmax.f32 %v525, 0.0
        %v622 = vmax.f32 %v528, 0.0
        %v623 = vmax.f32 %v533, 0.0
        %v624 = vmax.f32 %v536, 0.0
        %v625 = vmax.f32 %v541, 0.0
        %v626 = vmax.f32 %v544, 0.0
        %v627 = vmax.f32 %v549, 0.0
        %v628 = vmax.f32 %v552, 0.0
        %v629 = vmax.f32 %v557, 0.0
        %v630 = vmax.f32 %v560, 0.0
        %v631 = vmax.f32 %v565, 0.0
        %v632 = vmax.f32 %v568, 0.0
        %v633 = vmax.f32 %v573, 0.0
        %v634 = vmax.f32 %v576, 0.0
        %v635 = vmax.f32 %v581, 0.0
        %v636 = vmax.f32 %v584, 0.0
        %v637 = vmax.f32 %v589, 0.0
        %v638 = vmax.f32 %v592, 0.0
        %v639 = vmax.f32 %v597, 0.0
        %v640 = vmax.f32 %v600, 0.0
        %v641 = vmax.f32 %v605, 0.0
        %v642 = vmax.f32 %v608, 0.0
        %v643 = vpack.c.bf16 %v612, %v611
        %v644 = vpack.c.bf16 %v614, %v613
        %v645 = vpack.c.bf16 %v616, %v615
        %v646 = vpack.c.bf16 %v618, %v617
        %v647 = vpack.c.bf16 %v620, %v619
        %v648 = vpack.c.bf16 %v622, %v621
        %v649 = vpack.c.bf16 %v624, %v623
        %v650 = vpack.c.bf16 %v626, %v625
        %v651 = vpack.c.bf16 %v628, %v627
        %v652 = vpack.c.bf16 %v630, %v629
        %v653 = vpack.c.bf16 %v632, %v631
        %v654 = vpack.c.bf16 %v634, %v633
        %v655 = vpack.c.bf16 %v636, %v635
        %v656 = vpack.c.bf16 %v638, %v637
        %v657 = vpack.c.bf16 %v640, %v639
        %v658 = vpack.c.bf16 %v642, %v641
        %v659 = vld [vmem:[%s4] sm:$0xf]
        %v660 = vld [vmem:[%s4 + $0x4] sm:$0xf]
        %v661 = vld [vmem:[%s4 + $0x8] sm:$0xf]
        %v662 = vld [vmem:[%s4 + $0xc] sm:$0xf]
        %v663 = vld [vmem:[%s4 + $0x10] sm:$0xf]
        %v664 = vld [vmem:[%s4 + $0x14] sm:$0xf]
        %v665 = vld [vmem:[%s4 + $0x18] sm:$0xf]
        %v666 = vld [vmem:[%s4 + $0x1c] sm:$0xf]
        %v667 = vld [vmem:[%s4 + $0x20] sm:$0xf]
        %v668 = vld [vmem:[%s4 + $0x24] sm:$0xf]
        %v669 = vld [vmem:[%s4 + $0x28] sm:$0xf]
        %v670 = vld [vmem:[%s4 + $0x2c] sm:$0xf]
        %v671 = vld [vmem:[%s4 + $0x30] sm:$0xf]
        %v672 = vld [vmem:[%s4 + $0x34] sm:$0xf]
        %v673 = vld [vmem:[%s4 + $0x38] sm:$0xf]
        %v674 = vld [vmem:[%s4 + $0x3c] sm:$0xf]
        %v675 = vld [vmem:[%s5] sm:$0x1]
        %v677 = vlaneseq
        %v678 = vshrl.u32 %v677, 7
        %v679 = vsub.s32 0, %v678
        %v680 = vrot.slane %v675, %v679
        %v698 = vunpack.c.l.b16 %v659
        %v699 = vunpack.c.l.b16 %v660
        %v700 = vunpack.c.l.b16 %v661
        %v701 = vunpack.c.l.b16 %v662
        %v702 = vunpack.c.l.b16 %v663
        %v703 = vunpack.c.l.b16 %v664
        %v704 = vunpack.c.l.b16 %v665
        %v705 = vunpack.c.l.b16 %v666
        %v706 = vunpack.c.l.b16 %v667
        %v707 = vunpack.c.l.b16 %v668
        %v708 = vunpack.c.l.b16 %v669
        %v709 = vunpack.c.l.b16 %v670
        %v710 = vunpack.c.l.b16 %v671
        %v711 = vunpack.c.l.b16 %v672
        %v712 = vunpack.c.l.b16 %v673
        %v713 = vunpack.c.l.b16 %v674
        %v714 = vpack.c.b16 %v699, %v698
        %v715 = vpack.c.b16 %v701, %v700
        %v716 = vpack.c.b16 %v703, %v702
        %v717 = vpack.c.b16 %v705, %v704
        %v718 = vpack.c.b16 %v707, %v706
        %v719 = vpack.c.b16 %v709, %v708
        %v720 = vpack.c.b16 %v711, %v710
        %v721 = vpack.c.b16 %v713, %v712
        %730 = vmatprep.subr.bf16.mxu0 0
        %731 = vmatpush1.bf16.msra.mxu0 %v714
        %732 = vmatprep.subr.bf16.mxu0 0
        %733 = vmatpush1.bf16.msra.mxu0 %v715
        %734 = vmatprep.subr.bf16.mxu0 0
        %735 = vmatpush1.bf16.msra.mxu0 %v716
        %736 = vmatprep.subr.bf16.mxu0 0
        %737 = vmatpush1.bf16.msra.mxu0 %v717
        %738 = vmatprep.subr.bf16.mxu0 0
        %739 = vmatpush1.bf16.msra.mxu0 %v718
        %740 = vmatprep.subr.bf16.mxu0 0
        %741 = vmatpush1.bf16.msra.mxu0 %v719
        %742 = vmatprep.subr.bf16.mxu0 0
        %743 = vmatpush1.bf16.msra.mxu0 %v720
        %744 = vmatprep.subr.bf16.mxu0 0
        %745 = vmatpush1.bf16.msra.mxu0 %v721
        %746 = vmatprep.subr.bf16.mxu0 0
        %747 = vmatpush1.bf16.msra.mxu0 0
        %748 = vmatprep.subr.bf16.mxu0 0
        %749 = vmatpush1.bf16.msra.mxu0 0
        %750 = vmatprep.subr.bf16.mxu0 0
        %751 = vmatpush1.bf16.msra.mxu0 0
        %752 = vmatprep.subr.bf16.mxu0 0
        %753 = vmatpush1.bf16.msra.mxu0 0
        %754 = vmatprep.subr.bf16.mxu0 0
        %755 = vmatpush1.bf16.msra.mxu0 0
        %756 = vmatprep.subr.bf16.mxu0 0
        %757 = vmatpush1.bf16.msra.mxu0 0
        %758 = vmatprep.subr.bf16.mxu0 0
        %759 = vmatpush1.bf16.msra.mxu0 0
        %760 = vmatprep.subr.bf16.mxu0 0
        %761 = vmatpush1.bf16.msra.mxu0 0
        %762 = vmatprep.mubr.bf16.mxu0 0
        %763 = vmatmul.mubr.bf16.gmra.mrb[0].mxu0 %v643
        %v764 = vpop.f32.mrb[0].mxu0
        %v765 = vadd.f32 %v680, %v764
        %v766 = vpop.f32.mrb[0].mxu0
        %v767 = vpop.f32.mrb[0].mxu0
        %v768 = vadd.f32 %v680, %v767
        %v769 = vpop.f32.mrb[0].mxu0
        %770 = vmatprep.mubr.bf16.mxu0 0
        %771 = vmatmul.mubr.bf16.gmra.mrb[0].mxu0 %v644
        %v772 = vpop.f32.mrb[0].mxu0
        %v773 = vadd.f32 %v680, %v772
        %v774 = vpop.f32.mrb[0].mxu0
        %v775 = vpop.f32.mrb[0].mxu0
        %v776 = vadd.f32 %v680, %v775
        %v777 = vpop.f32.mrb[0].mxu0
        %778 = vmatprep.mubr.bf16.mxu0 0
        %779 = vmatmul.mubr.bf16.gmra.mrb[0].mxu0 %v645
        %v780 = vpop.f32.mrb[0].mxu0
        %v781 = vadd.f32 %v680, %v780
        %v782 = vpop.f32.mrb[0].mxu0
        %v783 = vpop.f32.mrb[0].mxu0
        %v784 = vadd.f32 %v680, %v783
        %v785 = vpop.f32.mrb[0].mxu0
        %786 = vmatprep.mubr.bf16.mxu0 0
        %787 = vmatmul.mubr.bf16.gmra.mrb[0].mxu0 %v646
        %v788 = vpop.f32.mrb[0].mxu0
        %v789 = vadd.f32 %v680, %v788
        %v790 = vpop.f32.mrb[0].mxu0
        %v791 = vpop.f32.mrb[0].mxu0
        %v792 = vadd.f32 %v680, %v791
        %v793 = vpop.f32.mrb[0].mxu0
        %794 = vmatprep.mubr.bf16.mxu0 0
        %795 = vmatmul.mubr.bf16.gmra.mrb[0].mxu0 %v647
        %v796 = vpop.f32.mrb[0].mxu0
        %v797 = vadd.f32 %v680, %v796
        %v798 = vpop.f32.mrb[0].mxu0
        %v799 = vpop.f32.mrb[0].mxu0
        %v800 = vadd.f32 %v680, %v799
        %v801 = vpop.f32.mrb[0].mxu0
        %802 = vmatprep.mubr.bf16.mxu0 0
        %803 = vmatmul.mubr.bf16.gmra.mrb[0].mxu0 %v648
        %v804 = vpop.f32.mrb[0].mxu0
        %v805 = vadd.f32 %v680, %v804
        %v806 = vpop.f32.mrb[0].mxu0
        %v807 = vpop.f32.mrb[0].mxu0
        %v808 = vadd.f32 %v680, %v807
        %v809 = vpop.f32.mrb[0].mxu0
        %810 = vmatprep.mubr.bf16.mxu0 0
        %811 = vmatmul.mubr.bf16.gmra.mrb[0].mxu0 %v649
        %v812 = vpop.f32.mrb[0].mxu0
        %v813 = vadd.f32 %v680, %v812
        %v814 = vpop.f32.mrb[0].mxu0
        %v815 = vpop.f32.mrb[0].mxu0
        %v816 = vadd.f32 %v680, %v815
        %v817 = vpop.f32.mrb[0].mxu0
        %818 = vmatprep.mubr.bf16.mxu0 0
        %819 = vmatmul.mubr.bf16.gmra.mrb[0].mxu0 %v650
        %v820 = vpop.f32.mrb[0].mxu0
        %v821 = vadd.f32 %v680, %v820
        %v822 = vpop.f32.mrb[0].mxu0
        %v823 = vpop.f32.mrb[0].mxu0
        %v824 = vadd.f32 %v680, %v823
        %v825 = vpop.f32.mrb[0].mxu0
        %826 = vmatprep.mubr.bf16.mxu0 0
        %827 = vmatmul.mubr.bf16.gmra.mrb[0].mxu0 %v651
        %v828 = vpop.f32.mrb[0].mxu0
        %v829 = vadd.f32 %v680, %v828
        %v830 = vpop.f32.mrb[0].mxu0
        %v831 = vpop.f32.mrb[0].mxu0
        %v832 = vadd.f32 %v680, %v831
        %v833 = vpop.f32.mrb[0].mxu0
        %834 = vmatprep.mubr.bf16.mxu0 0
        %835 = vmatmul.mubr.bf16.gmra.mrb[0].mxu0 %v652
        %v836 = vpop.f32.mrb[0].mxu0
        %v837 = vadd.f32 %v680, %v836
        %v838 = vpop.f32.mrb[0].mxu0
        %v839 = vpop.f32.mrb[0].mxu0
        %v840 = vadd.f32 %v680, %v839
        %v841 = vpop.f32.mrb[0].mxu0
        %842 = vmatprep.mubr.bf16.mxu0 0
        %843 = vmatmul.mubr.bf16.gmra.mrb[0].mxu0 %v653
        %v844 = vpop.f32.mrb[0].mxu0
        %v845 = vadd.f32 %v680, %v844
        %v846 = vpop.f32.mrb[0].mxu0
        %v847 = vpop.f32.mrb[0].mxu0
        %v848 = vadd.f32 %v680, %v847
        %v849 = vpop.f32.mrb[0].mxu0
        %850 = vmatprep.mubr.bf16.mxu0 0
        %851 = vmatmul.mubr.bf16.gmra.mrb[0].mxu0 %v654
        %v852 = vpop.f32.mrb[0].mxu0
        %v853 = vadd.f32 %v680, %v852
        %v854 = vpop.f32.mrb[0].mxu0
        %v855 = vpop.f32.mrb[0].mxu0
        %v856 = vadd.f32 %v680, %v855
        %v857 = vpop.f32.mrb[0].mxu0
        %858 = vmatprep.mubr.bf16.mxu0 0
        %859 = vmatmul.mubr.bf16.gmra.mrb[0].mxu0 %v655
        %v860 = vpop.f32.mrb[0].mxu0
        %v861 = vadd.f32 %v680, %v860
        %v862 = vpop.f32.mrb[0].mxu0
        %v863 = vpop.f32.mrb[0].mxu0
        %v864 = vadd.f32 %v680, %v863
        %v865 = vpop.f32.mrb[0].mxu0
        %866 = vmatprep.mubr.bf16.mxu0 0
        %867 = vmatmul.mubr.bf16.gmra.mrb[0].mxu0 %v656
        %v868 = vpop.f32.mrb[0].mxu0
        %v869 = vadd.f32 %v680, %v868
        %v870 = vpop.f32.mrb[0].mxu0
        %v871 = vpop.f32.mrb[0].mxu0
        %v872 = vadd.f32 %v680, %v871
        %v873 = vpop.f32.mrb[0].mxu0
        %874 = vmatprep.mubr.bf16.mxu0 0
        %875 = vmatmul.mubr.bf16.gmra.mrb[0].mxu0 %v657
        %v876 = vpop.f32.mrb[0].mxu0
        %v877 = vadd.f32 %v680, %v876
        %v878 = vpop.f32.mrb[0].mxu0
        %v879 = vpop.f32.mrb[0].mxu0
        %v880 = vadd.f32 %v680, %v879
        %v881 = vpop.f32.mrb[0].mxu0
        %882 = vmatprep.mubr.bf16.mxu0 0
        %883 = vmatmul.mubr.bf16.gmra.mrb[0].mxu0 %v658
        %v884 = vpop.f32.mrb[0].mxu0
        %v885 = vadd.f32 %v680, %v884
        %v886 = vpop.f32.mrb[0].mxu0
        %v887 = vpop.f32.mrb[0].mxu0
        %v888 = vadd.f32 %v680, %v887
        %v889 = vpop.f32.mrb[0].mxu0
        %890 = vdwg.mxu0
        %v891 = vmax.f32 %v765, 0.0
        %v892 = vmax.f32 %v768, 0.0
        %v893 = vmax.f32 %v773, 0.0
        %v894 = vmax.f32 %v776, 0.0
        %v895 = vmax.f32 %v781, 0.0
        %v896 = vmax.f32 %v784, 0.0
        %v897 = vmax.f32 %v789, 0.0
        %v898 = vmax.f32 %v792, 0.0
        %v899 = vmax.f32 %v797, 0.0
        %v900 = vmax.f32 %v800, 0.0
        %v901 = vmax.f32 %v805, 0.0
        %v902 = vmax.f32 %v808, 0.0
        %v903 = vmax.f32 %v813, 0.0
        %v904 = vmax.f32 %v816, 0.0
        %v905 = vmax.f32 %v821, 0.0
        %v906 = vmax.f32 %v824, 0.0
        %v907 = vmax.f32 %v829, 0.0
        %v908 = vmax.f32 %v832, 0.0
        %v909 = vmax.f32 %v837, 0.0
        %v910 = vmax.f32 %v840, 0.0
        %v911 = vmax.f32 %v845, 0.0
        %v912 = vmax.f32 %v848, 0.0
        %v913 = vmax.f32 %v853, 0.0
        %v914 = vmax.f32 %v856, 0.0
        %v915 = vmax.f32 %v861, 0.0
        %v916 = vmax.f32 %v864, 0.0
        %v917 = vmax.f32 %v869, 0.0
        %v918 = vmax.f32 %v872, 0.0
        %v919 = vmax.f32 %v877, 0.0
        %v920 = vmax.f32 %v880, 0.0
        %v921 = vmax.f32 %v885, 0.0
        %v922 = vmax.f32 %v888, 0.0
        %v923 = vpack.c.bf16 %v892, %v891
        %v924 = vpack.c.bf16 %v894, %v893
        %v925 = vpack.c.bf16 %v896, %v895
        %v926 = vpack.c.bf16 %v898, %v897
        %v927 = vpack.c.bf16 %v900, %v899
        %v928 = vpack.c.bf16 %v902, %v901
        %v929 = vpack.c.bf16 %v904, %v903
        %v930 = vpack.c.bf16 %v906, %v905
        %v931 = vpack.c.bf16 %v908, %v907
        %v932 = vpack.c.bf16 %v910, %v909
        %v933 = vpack.c.bf16 %v912, %v911
        %v934 = vpack.c.bf16 %v914, %v913
        %v935 = vpack.c.bf16 %v916, %v915
        %v936 = vpack.c.bf16 %v918, %v917
        %v937 = vpack.c.bf16 %v920, %v919
        %v938 = vpack.c.bf16 %v922, %v921
        %v939 = vld [vmem:[%s0] sm:$0xf]
        %v940 = vld [vmem:[%s0 + $0x4] sm:$0xf]
        %v941 = vld [vmem:[%s0 + $0x8] sm:$0xf]
        %v942 = vld [vmem:[%s0 + $0xc] sm:$0xf]
        %v943 = vld [vmem:[%s0 + $0x10] sm:$0xf]
        %v944 = vld [vmem:[%s0 + $0x14] sm:$0xf]
        %v945 = vld [vmem:[%s0 + $0x18] sm:$0xf]
        %v946 = vld [vmem:[%s0 + $0x1c] sm:$0xf]
        %v947 = vld [vmem:[%s0 + $0x20] sm:$0xf]
        %v948 = vld [vmem:[%s0 + $0x24] sm:$0xf]
        %v949 = vld [vmem:[%s0 + $0x28] sm:$0xf]
        %v950 = vld [vmem:[%s0 + $0x2c] sm:$0xf]
        %v951 = vld [vmem:[%s0 + $0x30] sm:$0xf]
        %v952 = vld [vmem:[%s0 + $0x34] sm:$0xf]
        %v953 = vld [vmem:[%s0 + $0x38] sm:$0xf]
        %v954 = vld [vmem:[%s0 + $0x3c] sm:$0xf]
        %v971 = vunpack.c.l.b16 %v939
        %v972 = vunpack.c.l.b16 %v940
        %v973 = vunpack.c.l.b16 %v941
        %v974 = vunpack.c.l.b16 %v942
        %v975 = vunpack.c.l.b16 %v943
        %v976 = vunpack.c.l.b16 %v944
        %v977 = vunpack.c.l.b16 %v945
        %v978 = vunpack.c.l.b16 %v946
        %v979 = vunpack.c.l.b16 %v947
        %v980 = vunpack.c.l.b16 %v948
        %v981 = vunpack.c.l.b16 %v949
        %v982 = vunpack.c.l.b16 %v950
        %v983 = vunpack.c.l.b16 %v951
        %v984 = vunpack.c.l.b16 %v952
        %v985 = vunpack.c.l.b16 %v953
        %v986 = vunpack.c.l.b16 %v954
        %v987 = vpack.c.b16 %v972, %v971
        %v988 = vpack.c.b16 %v974, %v973
        %v989 = vpack.c.b16 %v976, %v975
        %v990 = vpack.c.b16 %v978, %v977
        %v991 = vpack.c.b16 %v980, %v979
        %v992 = vpack.c.b16 %v982, %v981
        %v993 = vpack.c.b16 %v984, %v983
        %v994 = vpack.c.b16 %v986, %v985
        %1003 = vmatprep.subr.bf16.mxu0 0
        %1004 = vmatpush1.bf16.xpose.msra.mxu0 %v923
        %1005 = vmatprep.subr.bf16.mxu0 0
        %1006 = vmatpush1.bf16.xpose.msra.mxu0 %v924
        %1007 = vmatprep.subr.bf16.mxu0 0
        %1008 = vmatpush1.bf16.xpose.msra.mxu0 %v925
        %1009 = vmatprep.subr.bf16.mxu0 0
        %1010 = vmatpush1.bf16.xpose.msra.mxu0 %v926
        %1011 = vmatprep.subr.bf16.mxu0 0
        %1012 = vmatpush1.bf16.xpose.msra.mxu0 %v927
        %1013 = vmatprep.subr.bf16.mxu0 0
        %1014 = vmatpush1.bf16.xpose.msra.mxu0 %v928
        %1015 = vmatprep.subr.bf16.mxu0 0
        %1016 = vmatpush1.bf16.xpose.msra.mxu0 %v929
        %1017 = vmatprep.subr.bf16.mxu0 0
        %1018 = vmatpush1.bf16.xpose.msra.mxu0 %v930
        %1019 = vmatprep.subr.bf16.mxu0 0
        %1020 = vmatpush1.bf16.xpose.msra.mxu0 %v931
        %1021 = vmatprep.subr.bf16.mxu0 0
        %1022 = vmatpush1.bf16.xpose.msra.mxu0 %v932
        %1023 = vmatprep.subr.bf16.mxu0 0
        %1024 = vmatpush1.bf16.xpose.msra.mxu0 %v933
        %1025 = vmatprep.subr.bf16.mxu0 0
        %1026 = vmatpush1.bf16.xpose.msra.mxu0 %v934
        %1027 = vmatprep.subr.bf16.mxu0 0
        %1028 = vmatpush1.bf16.xpose.msra.mxu0 %v935
        %1029 = vmatprep.subr.bf16.mxu0 0
        %1030 = vmatpush1.bf16.xpose.msra.mxu0 %v936
        %1031 = vmatprep.subr.bf16.mxu0 0
        %1032 = vmatpush1.bf16.xpose.msra.mxu0 %v937
        %1033 = vmatprep.subr.bf16.mxu0 0
        %1034 = vmatpush1.bf16.xpose.msra.mxu0 %v938
        %1035 = vmatprep.mubr.bf16.mxu0 0
        %1036 = vmatmul.mubr.bf16.gmra.mrb[0].mxu0 %v987
        %v1037 = vpop.f32.mrb[0].mxu0
        %v1038 = vadd.f32 0.0, %v1037
        %v1039 = vpop.f32.mrb[0].mxu0
        %v1040 = vadd.f32 0.0, %v1039
        %v1041 = vpop.f32.mrb[0].mxu0
        %v1042 = vadd.f32 0.0, %v1041
        %v1043 = vpop.f32.mrb[0].mxu0
        %v1044 = vadd.f32 0.0, %v1043
        %1045 = vmatprep.mubr.bf16.mxu0 0
        %1046 = vmatmul.mubr.bf16.gmra.mrb[0].mxu0 %v988
        %v1047 = vpop.f32.mrb[0].mxu0
        %v1048 = vadd.f32 0.0, %v1047
        %v1049 = vpop.f32.mrb[0].mxu0
        %v1050 = vadd.f32 0.0, %v1049
        %v1051 = vpop.f32.mrb[0].mxu0
        %v1052 = vadd.f32 0.0, %v1051
        %v1053 = vpop.f32.mrb[0].mxu0
        %v1054 = vadd.f32 0.0, %v1053
        %1055 = vmatprep.mubr.bf16.mxu0 0
        %1056 = vmatmul.mubr.bf16.gmra.mrb[0].mxu0 %v989
        %v1057 = vpop.f32.mrb[0].mxu0
        %v1058 = vadd.f32 0.0, %v1057
        %v1059 = vpop.f32.mrb[0].mxu0
        %v1060 = vadd.f32 0.0, %v1059
        %v1061 = vpop.f32.mrb[0].mxu0
        %v1062 = vadd.f32 0.0, %v1061
        %v1063 = vpop.f32.mrb[0].mxu0
        %v1064 = vadd.f32 0.0, %v1063
        %1065 = vmatprep.mubr.bf16.mxu0 0
        %1066 = vmatmul.mubr.bf16.gmra.mrb[0].mxu0 %v990
        %v1067 = vpop.f32.mrb[0].mxu0
        %v1068 = vadd.f32 0.0, %v1067
        %v1069 = vpop.f32.mrb[0].mxu0
        %v1070 = vadd.f32 0.0, %v1069
        %v1071 = vpop.f32.mrb[0].mxu0
        %v1072 = vadd.f32 0.0, %v1071
        %v1073 = vpop.f32.mrb[0].mxu0
        %v1074 = vadd.f32 0.0, %v1073
        %1075 = vmatprep.mubr.bf16.mxu0 0
        %1076 = vmatmul.mubr.bf16.gmra.mrb[0].mxu0 %v991
        %v1077 = vpop.f32.mrb[0].mxu0
        %v1078 = vadd.f32 0.0, %v1077
        %v1079 = vpop.f32.mrb[0].mxu0
        %v1080 = vadd.f32 0.0, %v1079
        %v1081 = vpop.f32.mrb[0].mxu0
        %v1082 = vadd.f32 0.0, %v1081
        %v1083 = vpop.f32.mrb[0].mxu0
        %v1084 = vadd.f32 0.0, %v1083
        %1085 = vmatprep.mubr.bf16.mxu0 0
        %1086 = vmatmul.mubr.bf16.gmra.mrb[0].mxu0 %v992
        %v1087 = vpop.f32.mrb[0].mxu0
        %v1088 = vadd.f32 0.0, %v1087
        %v1089 = vpop.f32.mrb[0].mxu0
        %v1090 = vadd.f32 0.0, %v1089
        %v1091 = vpop.f32.mrb[0].mxu0
        %v1092 = vadd.f32 0.0, %v1091
        %v1093 = vpop.f32.mrb[0].mxu0
        %v1094 = vadd.f32 0.0, %v1093
        %1095 = vmatprep.mubr.bf16.mxu0 0
        %1096 = vmatmul.mubr.bf16.gmra.mrb[0].mxu0 %v993
        %v1097 = vpop.f32.mrb[0].mxu0
        %v1098 = vadd.f32 0.0, %v1097
        %v1099 = vpop.f32.mrb[0].mxu0
        %v1100 = vadd.f32 0.0, %v1099
        %v1101 = vpop.f32.mrb[0].mxu0
        %v1102 = vadd.f32 0.0, %v1101
        %v1103 = vpop.f32.mrb[0].mxu0
        %v1104 = vadd.f32 0.0, %v1103
        %1105 = vmatprep.mubr.bf16.mxu0 0
        %1106 = vmatmul.mubr.bf16.gmra.mrb[0].mxu0 %v994
        %v1107 = vpop.f32.mrb[0].mxu0
        %v1108 = vadd.f32 0.0, %v1107
        %v1109 = vpop.f32.mrb[0].mxu0
        %v1110 = vadd.f32 0.0, %v1109
        %v1111 = vpop.f32.mrb[0].mxu0
        %v1112 = vadd.f32 0.0, %v1111
        %v1113 = vpop.f32.mrb[0].mxu0
        %v1114 = vadd.f32 0.0, %v1113
        %1115 = vdwg.mxu0
        %v1116 = vpack.c.bf16 %v1042, %v1038
        %v1117 = vpack.c.bf16 %v1044, %v1040
        %v1118 = vpack.c.bf16 %v1052, %v1048
        %v1119 = vpack.c.bf16 %v1054, %v1050
        %v1120 = vpack.c.bf16 %v1062, %v1058
        %v1121 = vpack.c.bf16 %v1064, %v1060
        %v1122 = vpack.c.bf16 %v1072, %v1068
        %v1123 = vpack.c.bf16 %v1074, %v1070
        %v1124 = vpack.c.bf16 %v1082, %v1078
        %v1125 = vpack.c.bf16 %v1084, %v1080
        %v1126 = vpack.c.bf16 %v1092, %v1088
        %v1127 = vpack.c.bf16 %v1094, %v1090
        %v1128 = vpack.c.bf16 %v1102, %v1098
        %v1129 = vpack.c.bf16 %v1104, %v1100
        %v1130 = vpack.c.bf16 %v1112, %v1108
        %v1131 = vpack.c.bf16 %v1114, %v1110
        %v1148 = vunpack.c.l.b16 %v1116
        %v1149 = vunpack.c.l.b16 %v1117
        %v1150 = vunpack.c.h.b16 %v1116
        %v1151 = vunpack.c.h.b16 %v1117
        %v1152 = vunpack.c.l.b16 %v1118
        %v1153 = vunpack.c.l.b16 %v1119
        %v1154 = vunpack.c.h.b16 %v1118
        %v1155 = vunpack.c.h.b16 %v1119
        %v1156 = vunpack.c.l.b16 %v1120
        %v1157 = vunpack.c.l.b16 %v1121
        %v1158 = vunpack.c.h.b16 %v1120
        %v1159 = vunpack.c.h.b16 %v1121
        %v1160 = vunpack.c.l.b16 %v1122
        %v1161 = vunpack.c.l.b16 %v1123
        %v1162 = vunpack.c.h.b16 %v1122
        %v1163 = vunpack.c.h.b16 %v1123
        %v1164 = vunpack.c.l.b16 %v1124
        %v1165 = vunpack.c.l.b16 %v1125
        %v1166 = vunpack.c.h.b16 %v1124
        %v1167 = vunpack.c.h.b16 %v1125
        %v1168 = vunpack.c.l.b16 %v1126
        %v1169 = vunpack.c.l.b16 %v1127
        %v1170 = vunpack.c.h.b16 %v1126
        %v1171 = vunpack.c.h.b16 %v1127
        %v1172 = vunpack.c.l.b16 %v1128
        %v1173 = vunpack.c.l.b16 %v1129
        %v1174 = vunpack.c.h.b16 %v1128
        %v1175 = vunpack.c.h.b16 %v1129
        %v1176 = vunpack.c.l.b16 %v1130
        %v1177 = vunpack.c.l.b16 %v1131
        %v1178 = vunpack.c.h.b16 %v1130
        %v1179 = vunpack.c.h.b16 %v1131
        %v1180 = vpack.c.b16 %v1149, %v1148
        %v1181 = vpack.c.b16 %v1151, %v1150
        %v1182 = vpack.c.b16 %v1153, %v1152
        %v1183 = vpack.c.b16 %v1155, %v1154
        %v1184 = vpack.c.b16 %v1157, %v1156
        %v1185 = vpack.c.b16 %v1159, %v1158
        %v1186 = vpack.c.b16 %v1161, %v1160
        %v1187 = vpack.c.b16 %v1163, %v1162
        %v1188 = vpack.c.b16 %v1165, %v1164
        %v1189 = vpack.c.b16 %v1167, %v1166
        %v1190 = vpack.c.b16 %v1169, %v1168
        %v1191 = vpack.c.b16 %v1171, %v1170
        %v1192 = vpack.c.b16 %v1173, %v1172
        %v1193 = vpack.c.b16 %v1175, %v1174
        %v1194 = vpack.c.b16 %v1177, %v1176
        %v1195 = vpack.c.b16 %v1179, %v1178
        %1212 = vst [vmem:[%s241] sm:$0xff] %v1180
        %1213 = vst [vmem:[%s241 + $0x8] sm:$0xff] %v1181
        %1214 = vst [vmem:[%s241 + $0x10] sm:$0xff] %v1182
        %1215 = vst [vmem:[%s241 + $0x18] sm:$0xff] %v1183
        %1216 = vst [vmem:[%s241 + $0x20] sm:$0xff] %v1184
        %1217 = vst [vmem:[%s241 + $0x28] sm:$0xff] %v1185
        %1218 = vst [vmem:[%s241 + $0x30] sm:$0xff] %v1186
        %1219 = vst [vmem:[%s241 + $0x38] sm:$0xff] %v1187
        %1220 = vst [vmem:[%s241 + $0x40] sm:$0xff] %v1188
        %1221 = vst [vmem:[%s241 + $0x48] sm:$0xff] %v1189
        %1222 = vst [vmem:[%s241 + $0x50] sm:$0xff] %v1190
        %1223 = vst [vmem:[%s241 + $0x58] sm:$0xff] %v1191
        %1224 = vst [vmem:[%s241 + $0x60] sm:$0xff] %v1192
        %1225 = vst [vmem:[%s241 + $0x68] sm:$0xff] %v1193
        %1226 = vst [vmem:[%s241 + $0x70] sm:$0xff] %v1194
        %1227 = vst [vmem:[%s241 + $0x78] sm:$0xff] %v1195
        %s1228 = sand.u32 %s156, 1
        %s1229 = sand.u32 %s156, 1
        %s1230 = smul.addr %s1229, 128
        %s1231 = scalar_lea.vmem [#allocation2], %s1230
        // Predicated region
        $region45: #{two_tower_forward.1} parent=43 // pred_check
          %p1232 = pneg %p166
        $region46: #{two_tower_forward.1} parent=43 // pred_check_branch
          %1234 = sbr.rel (%p1232) target = $region48
        $region47: #{two_tower_forward.1} parent=43 // pred_region
          %s1235 = smul.u32 2, %s17
          %s1236 = smul.addr %s1235, 4
          %s1237 = scalar_lea.vmem %s6, %s1236
          // Predicated region
          $region49: #{two_tower_forward.1} parent=47 // pred_check
            _
          $region50: #{two_tower_forward.1} parent=47 // pred_check_branch
            %1239 = sbr.rel (0) target = $region52
          $region51: #{two_tower_forward.1} parent=47 // pred_region
            // Predicated region
            $region53: #{two_tower_forward.1} parent=51 // pred_check
              _
            $region54: #{two_tower_forward.1} parent=51 // pred_check_branch
              %1241 = sbr.rel (0) target = $region56
            $region55: #{two_tower_forward.1} parent=51 // pred_region
              // Predicated region
              $region68: #{two_tower_forward.1} parent=55 // pred_check
                _
              $region69: #{two_tower_forward.1} parent=55 // pred_check_branch
                %1286 = sbr.rel (0) target = $region71
              $region70: #{two_tower_forward.1} parent=55 // pred_region
                loop: start=0, step=1, limit=1
                $region72: #{two_tower_forward.1} parent=70 // loop_pre_header
                  _
                $region73: #{two_tower_forward.1} parent=70 // loop_header
                  %s1288 = sphi 0, %s1292
                  %p1289 = scmp.ge.s32.totalorder %s1288, 1
                  %s1293 = sphi %s1231, %s1231
                  %s1294 = sphi %s1237, %s1237
                $region74: #{two_tower_forward.1} parent=70 // loop_header_branch
                  %1291 = sbr.rel (%p1289) target = $region78
                $region75: #{two_tower_forward.1} parent=70 // loop_body
                  %v1295 = vld [vmem:[%s1293] sm:$0xff]
                  %1296 = vst [vmem:[%s1294] sm:$0xff] %v1295
                  %v1297 = vld [vmem:[%s1293 + $0x8] sm:$0xff]
                  %1298 = vst [vmem:[%s1294 + $0x10] sm:$0xff] %v1297
                  %v1299 = vld [vmem:[%s1293 + $0x10] sm:$0xff]
                  %1300 = vst [vmem:[%s1294 + $0x20] sm:$0xff] %v1299
                  %v1301 = vld [vmem:[%s1293 + $0x18] sm:$0xff]
                  %1302 = vst [vmem:[%s1294 + $0x30] sm:$0xff] %v1301
                  %v1303 = vld [vmem:[%s1293 + $0x20] sm:$0xff]
                  %1304 = vst [vmem:[%s1294 + $0x40] sm:$0xff] %v1303
                  %v1305 = vld [vmem:[%s1293 + $0x28] sm:$0xff]
                  %1306 = vst [vmem:[%s1294 + $0x50] sm:$0xff] %v1305
                  %v1307 = vld [vmem:[%s1293 + $0x30] sm:$0xff]
                  %1308 = vst [vmem:[%s1294 + $0x60] sm:$0xff] %v1307
                  %v1309 = vld [vmem:[%s1293 + $0x38] sm:$0xff]
                  %1310 = vst [vmem:[%s1294 + $0x70] sm:$0xff] %v1309
                  %v1311 = vld [vmem:[%s1293 + $0x40] sm:$0xff]
                  %1312 = vst [vmem:[%s1294 + $0x80] sm:$0xff] %v1311
                  %v1313 = vld [vmem:[%s1293 + $0x48] sm:$0xff]
                  %1314 = vst [vmem:[%s1294 + $0x90] sm:$0xff] %v1313
                  %v1315 = vld [vmem:[%s1293 + $0x50] sm:$0xff]
                  %1316 = vst [vmem:[%s1294 + $0xa0] sm:$0xff] %v1315
                  %v1317 = vld [vmem:[%s1293 + $0x58] sm:$0xff]
                  %1318 = vst [vmem:[%s1294 + $0xb0] sm:$0xff] %v1317
                  %v1319 = vld [vmem:[%s1293 + $0x60] sm:$0xff]
                  %1320 = vst [vmem:[%s1294 + $0xc0] sm:$0xff] %v1319
                  %v1321 = vld [vmem:[%s1293 + $0x68] sm:$0xff]
                  %1322 = vst [vmem:[%s1294 + $0xd0] sm:$0xff] %v1321
                  %v1323 = vld [vmem:[%s1293 + $0x70] sm:$0xff]
                  %1324 = vst [vmem:[%s1294 + $0xe0] sm:$0xff] %v1323
                  %v1325 = vld [vmem:[%s1293 + $0x78] sm:$0xff]
                  %1326 = vst [vmem:[%s1294 + $0xf0] sm:$0xff] %v1325
                $region76: #{two_tower_forward.1} parent=70 // loop_footer
                  %s1292 = sadd.s32 1, %s1288
                $region77: #{two_tower_forward.1} parent=70 // loop_footer_branch
                  %1287 = sbr.rel target = $region73
                $region78: #{two_tower_forward.1} parent=70 // loop_exit
                  _
              $region71: #{two_tower_forward.1} parent=55 // pred_fallthru
                _
              // Predicated region
              $region79: #{two_tower_forward.1} parent=55 // pred_check
                _
              $region80: #{two_tower_forward.1} parent=55 // pred_check_branch
                %1328 = sbr.rel target = $region82
              $region81: #{two_tower_forward.1} parent=55 // pred_region
                _
              $region82: #{two_tower_forward.1} parent=55 // pred_fallthru
                _
            $region56: #{two_tower_forward.1} parent=51 // pred_fallthru
              _
            // Predicated region
            $region57: #{two_tower_forward.1} parent=51 // pred_check
              _
            $region58: #{two_tower_forward.1} parent=51 // pred_check_branch
              %1243 = sbr.rel target = $region60
            $region59: #{two_tower_forward.1} parent=51 // pred_region
              loop: start=0, step=1, limit=1
              $region61: #{two_tower_forward.1} parent=59 // loop_pre_header
                _
              $region62: #{two_tower_forward.1} parent=59 // loop_header
                %s1246 = sphi 0, %s1250
                %p1247 = scmp.ge.s32.totalorder %s1246, 1
                %s1251 = sphi %s1231, %s1231
                %s1252 = sphi %s1237, %s1237
              $region63: #{two_tower_forward.1} parent=59 // loop_header_branch
                %1249 = sbr.rel (%p1247) target = $region67
              $region64: #{two_tower_forward.1} parent=59 // loop_body
                %v1253 = vld [vmem:[%s1251] sm:$0xff]
                %1254 = vst [vmem:[%s1252] sm:$0xff] %v1253
                %v1255 = vld [vmem:[%s1251 + $0x8] sm:$0xff]
                %1256 = vst [vmem:[%s1252 + $0x10] sm:$0xff] %v1255
                %v1257 = vld [vmem:[%s1251 + $0x10] sm:$0xff]
                %1258 = vst [vmem:[%s1252 + $0x20] sm:$0xff] %v1257
                %v1259 = vld [vmem:[%s1251 + $0x18] sm:$0xff]
                %1260 = vst [vmem:[%s1252 + $0x30] sm:$0xff] %v1259
                %v1261 = vld [vmem:[%s1251 + $0x20] sm:$0xff]
                %1262 = vst [vmem:[%s1252 + $0x40] sm:$0xff] %v1261
                %v1263 = vld [vmem:[%s1251 + $0x28] sm:$0xff]
                %1264 = vst [vmem:[%s1252 + $0x50] sm:$0xff] %v1263
                %v1265 = vld [vmem:[%s1251 + $0x30] sm:$0xff]
                %1266 = vst [vmem:[%s1252 + $0x60] sm:$0xff] %v1265
                %v1267 = vld [vmem:[%s1251 + $0x38] sm:$0xff]
                %1268 = vst [vmem:[%s1252 + $0x70] sm:$0xff] %v1267
                %v1269 = vld [vmem:[%s1251 + $0x40] sm:$0xff]
                %1270 = vst [vmem:[%s1252 + $0x80] sm:$0xff] %v1269
                %v1271 = vld [vmem:[%s1251 + $0x48] sm:$0xff]
                %1272 = vst [vmem:[%s1252 + $0x90] sm:$0xff] %v1271
                %v1273 = vld [vmem:[%s1251 + $0x50] sm:$0xff]
                %1274 = vst [vmem:[%s1252 + $0xa0] sm:$0xff] %v1273
                %v1275 = vld [vmem:[%s1251 + $0x58] sm:$0xff]
                %1276 = vst [vmem:[%s1252 + $0xb0] sm:$0xff] %v1275
                %v1277 = vld [vmem:[%s1251 + $0x60] sm:$0xff]
                %1278 = vst [vmem:[%s1252 + $0xc0] sm:$0xff] %v1277
                %v1279 = vld [vmem:[%s1251 + $0x68] sm:$0xff]
                %1280 = vst [vmem:[%s1252 + $0xd0] sm:$0xff] %v1279
                %v1281 = vld [vmem:[%s1251 + $0x70] sm:$0xff]
                %1282 = vst [vmem:[%s1252 + $0xe0] sm:$0xff] %v1281
                %v1283 = vld [vmem:[%s1251 + $0x78] sm:$0xff]
                %1284 = vst [vmem:[%s1252 + $0xf0] sm:$0xff] %v1283
              $region65: #{two_tower_forward.1} parent=59 // loop_footer
                %s1250 = sadd.s32 1, %s1246
              $region66: #{two_tower_forward.1} parent=59 // loop_footer_branch
                %1245 = sbr.rel target = $region62
              $region67: #{two_tower_forward.1} parent=59 // loop_exit
                _
            $region60: #{two_tower_forward.1} parent=51 // pred_fallthru
              _
          $region52: #{two_tower_forward.1} parent=47 // pred_fallthru
            _
          %1329 = vnop
        $region48: #{two_tower_forward.1} parent=43 // pred_fallthru
          _
      $region44: #{two_tower_forward.1} parent=5 // pred_fallthru
        _
      %p1330 = scmp.le.s32.totalorder 2, %s12
      // Predicated region
      $region83: #{two_tower_forward.1} parent=5 // pred_check
        %p1331 = pneg %p1330
      $region84: #{two_tower_forward.1} parent=5 // pred_check_branch
        %1333 = sbr.rel (%p1331) target = $region86
      $region85: #{two_tower_forward.1} parent=5 // pred_region
        %s1334 = ssub.s32 %s12, 2
        // Predicated region
        $region87: #{two_tower_forward.1} parent=85 // pred_check
          %p1335 = pneg %p172
        $region88: #{two_tower_forward.1} parent=85 // pred_check_branch
          %1337 = sbr.rel (%p1335) target = $region90
        $region89: #{two_tower_forward.1} parent=85 // pred_region
          %s1338 = sand.u32 %s157, 1
          %s1339 = sand.u32 %s157, 1
          %s1340 = smul.addr %s1339, 128
          %s1341 = scalar_lea.vmem [#allocation2], %s1340
        $region90: #{two_tower_forward.1} parent=85 // pred_fallthru
          _
      $region86: #{two_tower_forward.1} parent=5 // pred_fallthru
        _
    $region6: #{two_tower_forward.1} parent=1 // loop_footer
      %s16 = sadd.s32 1, %s12
    $region7: #{two_tower_forward.1} parent=1 // loop_footer_branch
      %11 = sbr.rel target = $region3
    $region8: #{two_tower_forward.1} parent=1 // loop_exit
      _

</llo_original>
